<compile_context>
chip_gen: v5e
topology: v5e:2x2
jax: 0.10.0
libtpu: 0.0.40
codegen_flags: <defaults>
</compile_context>

<pallas_src>
import functools
import math

import jax
import jax.numpy as jnp
from jax import lax
from jax.experimental import pallas as pl
from jax.experimental.pallas import tpu as pltpu


MIN_LOGVAR, MAX_LOGVAR = -4.0, 4.0


def _elu(x):
    # F.elu(alpha=1): x for x > 0, expm1(x) otherwise.
    # expm1 computed via the exact identity 2*t/(1-t) with t = tanh(x/2):
    # cancellation-free near 0 (matches torch's expm1-based ELU) and relies
    # only on tanh, which lowers to the EUP slot in Mosaic.
    t = jnp.tanh(0.5 * x)
    em1 = (2.0 * t) / (1.0 - t)
    return jnp.where(x > 0.0, x, em1)


def _round_up(x, m):
    return ((x + m - 1) // m) * m


def toy_decoder_kernel(
    z_ref,
    w1_ref, b1_ref,
    w2_ref, b2_ref,
    w3_ref, b3_ref,
    wh_ref, bh_ref,
    head_ref, hidden_ref,
    *, output_dim,
):
    f32 = jnp.float32
    z = z_ref[...]

    # fc1 / fc2 / fc3 + ELU. Weights arrive as bf16 (bandwidth win); upcast to
    # f32 in-register so the MXU accumulates in f32 and the VPU path stays f32.
    h = jnp.dot(z, w1_ref[...].astype(f32), preferred_element_type=f32) + b1_ref[...]
    h = _elu(h)
    h = jnp.dot(h, w2_ref[...].astype(f32), preferred_element_type=f32) + b2_ref[...]
    h = _elu(h)
    h = jnp.dot(h, w3_ref[...].astype(f32), preferred_element_type=f32) + b3_ref[...]
    h = _elu(h)

    # Fused mu/logvar head: one (hidden, 2*output_dim) matmul, one output slab.
    head = jnp.dot(h, wh_ref[...].astype(f32), preferred_element_type=f32) + bh_ref[...]
    col = lax.broadcasted_iota(jnp.int32, head.shape, 1)
    head = jnp.where(
        col >= output_dim,
        jnp.clip(head, MIN_LOGVAR, MAX_LOGVAR),  # Hardtanh(-4, 4) on logvar cols
        head,
    )

    head_ref[...] = head
    hidden_ref[...] = h


def toy_decoder_forward(z, params, *, batch_tile=1024):
    """z: (B, latent_dim) float32. params: dict from init_params()."""
    B, latent_dim = z.shape
    hidden_dim = params["w3"].shape[1]
    head_dim = params["w_head"].shape[1]  # 2 * output_dim
    output_dim = head_dim // 2

    # Batch tile: multiple of 8 (sublane), capped; pad batch to a whole number
    # of tiles (padded rows are wasted compute, sliced off afterwards).
    tb = min(batch_tile, _round_up(B, 8))
    b_pad = _round_up(B, tb)
    if b_pad != B:
        z = jnp.pad(z, ((0, b_pad - B), (0, 0)))
    grid = (b_pad // tb,)

    def batch_spec(cols):
        return pl.BlockSpec((tb, cols), lambda i: (i, 0))

    def const_spec(arr):
        # Constant block index -> weights/biases stay resident in VMEM across
        # batch tiles (no re-DMA).
        return pl.BlockSpec(arr.shape, lambda i: (0, 0))

    args = (
        z,
        params["w1"], params["b1"],
        params["w2"], params["b2"],
        params["w3"], params["b3"],
        params["w_head"], params["b_head"],
    )
    in_specs = [batch_spec(latent_dim)] + [const_spec(a) for a in args[1:]]

    # Advisory cost estimate so XLA can schedule/overlap this small custom call.
    flops = 2 * b_pad * (latent_dim * hidden_dim
                         + 2 * hidden_dim * hidden_dim
                         + hidden_dim * head_dim)
    transcendentals = 3 * b_pad * hidden_dim
    weight_bytes = sum(int(a.size) * a.dtype.itemsize for a in args[1:])
    bytes_accessed = weight_bytes + 4 * b_pad * (latent_dim + hidden_dim + head_dim)

    head, hidden = pl.pallas_call(
        functools.partial(toy_decoder_kernel, output_dim=output_dim),
        out_shape=(
            jax.ShapeDtypeStruct((b_pad, head_dim), jnp.float32),   # fused mu|logvar
            jax.ShapeDtypeStruct((b_pad, hidden_dim), jnp.float32), # hidden
        ),
        grid=grid,
        in_specs=in_specs,
        out_specs=(
            batch_spec(head_dim),
            batch_spec(hidden_dim),
        ),
        compiler_params=pltpu.CompilerParams(
            # Batch tiles are independent -> shard across both TCs on v7x;
            # harmless no-op on v5e/v6e.
            dimension_semantics=("parallel",),
        ),
        cost_estimate=pl.CostEstimate(
            flops=flops,
            transcendentals=transcendentals,
            bytes_accessed=bytes_accessed,
        ),
    )(*args)

    head = head[:B]
    return dict(
        mu=head[:, :output_dim],
        logvar=head[:, output_dim:],
        hidden=hidden[:B],
    )


def init_params(key, latent_dim=10, hidden_dim=256, output_dim=2):
    """PyTorch-Linear-style init. Weights stored (in, out): matmul weights as
    bfloat16 (bandwidth), biases f32. mu/logvar head weights are packed into a
    single (hidden, 2*output_dim) matrix."""
    def linear(k, fan_in, fan_out):
        kw, kb = jax.random.split(k)
        bound = 1.0 / math.sqrt(fan_in)
        w = jax.random.uniform(kw, (fan_in, fan_out), jnp.float32, -bound, bound)
        b = jax.random.uniform(kb, (1, fan_out), jnp.float32, -bound, bound)
        return w, b

    keys = jax.random.split(key, 5)
    w1, b1 = linear(keys[0], latent_dim, hidden_dim)
    w2, b2 = linear(keys[1], hidden_dim, hidden_dim)
    w3, b3 = linear(keys[2], hidden_dim, hidden_dim)
    wmu, bmu = linear(keys[3], hidden_dim, output_dim)
    wlv, blv = linear(keys[4], hidden_dim, output_dim)
    bf16 = jnp.bfloat16
    # fc4 is defined in the PyTorch module but never used in forward(); skipped.
    return dict(
        w1=w1.astype(bf16), b1=b1,
        w2=w2.astype(bf16), b2=b2,
        w3=w3.astype(bf16), b3=b3,
        w_head=jnp.concatenate([wmu, wlv], axis=1).astype(bf16),
        b_head=jnp.concatenate([bmu, blv], axis=1),
    )


def toy_decoder_ref(z, p):
    """Pure-JAX reference (same bf16-stored weights, upcast to f32)."""
    hi = lax.Precision.HIGHEST
    f32 = lambda a: a.astype(jnp.float32)
    h = _elu(jnp.dot(z, f32(p["w1"]), precision=hi) + p["b1"])
    h = _elu(jnp.dot(h, f32(p["w2"]), precision=hi) + p["b2"])
    h = _elu(jnp.dot(h, f32(p["w3"]), precision=hi) + p["b3"])
    head = jnp.dot(h, f32(p["w_head"]), precision=hi) + p["b_head"]
    od = p["w_head"].shape[1] // 2
    mu = head[:, :od]
    lv = jnp.clip(head[:, od:], MIN_LOGVAR, MAX_LOGVAR)
    return dict(mu=mu, logvar=lv, hidden=h)


if __name__ == "__main__":
    key = jax.random.PRNGKey(0)
    k_params, k_z = jax.random.split(key)

    latent_dim, hidden_dim, output_dim = 10, 256, 2
    batch = 8

    params = init_params(k_params, latent_dim, hidden_dim, output_dim)
    z = jax.random.normal(k_z, (batch, latent_dim), jnp.float32)

    out = toy_decoder_forward(z, params)
    jax.block_until_ready(out)

    ref = toy_decoder_ref(z, params)
    for name in ("mu", "logvar", "hidden"):
        assert out[name].shape == ref[name].shape, name
        assert jnp.allclose(out[name], ref[name], atol=1e-4, rtol=1e-4), name

    print("KERNEL_OK")
</pallas_src>

<mosaic_0001>
module attributes {stable_mosaic.version = 11 : i64} {
  func.func @toy_decoder_kernel(%arg0: i32, %arg1: memref<8x10xf32, #tpu.memory_space<vmem>>, %arg2: memref<10x256xbf16, #tpu.memory_space<vmem>>, %arg3: memref<1x256xf32, #tpu.memory_space<vmem>>, %arg4: memref<256x256xbf16, #tpu.memory_space<vmem>>, %arg5: memref<1x256xf32, #tpu.memory_space<vmem>>, %arg6: memref<256x256xbf16, #tpu.memory_space<vmem>>, %arg7: memref<1x256xf32, #tpu.memory_space<vmem>>, %arg8: memref<256x4xbf16, #tpu.memory_space<vmem>>, %arg9: memref<1x4xf32, #tpu.memory_space<vmem>>, %arg10: memref<8x4xf32, #tpu.memory_space<vmem>>, %arg11: memref<8x256xf32, #tpu.memory_space<vmem>>) attributes {dimension_semantics = [#tpu.dimension_semantics<parallel>], iteration_bounds = array<i64: 1>, scalar_prefetch = 0 : i64, scratch_operands = 0 : i64, tpu.core_type = #tpu.core_type<tc>, window_params = [{transform_indices = @transform_0, window_bounds = array<i64: 8, 10>}, {pipeline_mode = #tpu.pipeline_mode<synchronous>, transform_indices = @transform_1, window_bounds = array<i64: 10, 256>}, {pipeline_mode = #tpu.pipeline_mode<synchronous>, transform_indices = @transform_2, window_bounds = array<i64: 1, 256>}, {pipeline_mode = #tpu.pipeline_mode<synchronous>, transform_indices = @transform_3, window_bounds = array<i64: 256, 256>}, {pipeline_mode = #tpu.pipeline_mode<synchronous>, transform_indices = @transform_4, window_bounds = array<i64: 1, 256>}, {pipeline_mode = #tpu.pipeline_mode<synchronous>, transform_indices = @transform_5, window_bounds = array<i64: 256, 256>}, {pipeline_mode = #tpu.pipeline_mode<synchronous>, transform_indices = @transform_6, window_bounds = array<i64: 1, 256>}, {pipeline_mode = #tpu.pipeline_mode<synchronous>, transform_indices = @transform_7, window_bounds = array<i64: 256, 4>}, {pipeline_mode = #tpu.pipeline_mode<synchronous>, transform_indices = @transform_8, window_bounds = array<i64: 1, 4>}, {transform_indices = @transform_9, window_bounds = array<i64: 8, 4>}, {transform_indices = @transform_10, window_bounds = array<i64: 8, 256>}]} {
    %c0 = arith.constant 0 : index
    %c0_0 = arith.constant 0 : index
    %0 = vector.load %arg1[%c0, %c0_0] : memref<8x10xf32, #tpu.memory_space<vmem>>, vector<8x10xf32>
    %c0_1 = arith.constant 0 : index
    %c0_2 = arith.constant 0 : index
    %1 = vector.load %arg2[%c0_1, %c0_2] : memref<10x256xbf16, #tpu.memory_space<vmem>>, vector<10x256xbf16>
    %2 = arith.extf %1 : vector<10x256xbf16> to vector<10x256xf32>
    %cst = arith.constant dense<0.000000e+00> : vector<8x256xf32>
    %3 = tpu.matmul %0, %2, %cst {dimension_numbers = #tpu.dot_dimension_numbers<[1], [0], [0], [1], [0, 0, 1, 1], [], []>} : vector<8x10xf32>, vector<10x256xf32>, vector<8x256xf32> -> vector<8x256xf32>
    %c0_3 = arith.constant 0 : index
    %c0_4 = arith.constant 0 : index
    %4 = vector.load %arg3[%c0_3, %c0_4] : memref<1x256xf32, #tpu.memory_space<vmem>>, vector<1x256xf32>
    %5 = vector.broadcast %4 : vector<1x256xf32> to vector<8x256xf32>
    %6 = arith.addf %3, %5 : vector<8x256xf32>
    %cst_5 = arith.constant 5.000000e-01 : f32
    %7 = vector.broadcast %cst_5 : f32 to vector<8x256xf32>
    %8 = arith.mulf %7, %6 : vector<8x256xf32>
    %9 = math.tanh %8 : vector<8x256xf32>
    %cst_6 = arith.constant 2.000000e+00 : f32
    %10 = vector.broadcast %cst_6 : f32 to vector<8x256xf32>
    %11 = arith.mulf %10, %9 : vector<8x256xf32>
    %cst_7 = arith.constant 1.000000e+00 : f32
    %12 = vector.broadcast %cst_7 : f32 to vector<8x256xf32>
    %13 = arith.subf %12, %9 : vector<8x256xf32>
    %14 = arith.divf %11, %13 : vector<8x256xf32>
    %cst_8 = arith.constant 0.000000e+00 : f32
    %15 = vector.broadcast %cst_8 : f32 to vector<8x256xf32>
    %16 = arith.cmpf ogt, %6, %15 : vector<8x256xf32>
    %17 = arith.select %16, %6, %14 : vector<8x256xi1>, vector<8x256xf32>
    %c0_9 = arith.constant 0 : index
    %c0_10 = arith.constant 0 : index
    %18 = vector.load %arg4[%c0_9, %c0_10] : memref<256x256xbf16, #tpu.memory_space<vmem>>, vector<256x256xbf16>
    %19 = arith.extf %18 : vector<256x256xbf16> to vector<256x256xf32>
    %cst_11 = arith.constant dense<0.000000e+00> : vector<8x256xf32>
    %20 = tpu.matmul %17, %19, %cst_11 {dimension_numbers = #tpu.dot_dimension_numbers<[1], [0], [0], [1], [0, 0, 1, 1], [], []>} : vector<8x256xf32>, vector<256x256xf32>, vector<8x256xf32> -> vector<8x256xf32>
    %c0_12 = arith.constant 0 : index
    %c0_13 = arith.constant 0 : index
    %21 = vector.load %arg5[%c0_12, %c0_13] : memref<1x256xf32, #tpu.memory_space<vmem>>, vector<1x256xf32>
    %22 = vector.broadcast %21 : vector<1x256xf32> to vector<8x256xf32>
    %23 = arith.addf %20, %22 : vector<8x256xf32>
    %cst_14 = arith.constant 5.000000e-01 : f32
    %24 = vector.broadcast %cst_14 : f32 to vector<8x256xf32>
    %25 = arith.mulf %24, %23 : vector<8x256xf32>
    %26 = math.tanh %25 : vector<8x256xf32>
    %cst_15 = arith.constant 2.000000e+00 : f32
    %27 = vector.broadcast %cst_15 : f32 to vector<8x256xf32>
    %28 = arith.mulf %27, %26 : vector<8x256xf32>
    %cst_16 = arith.constant 1.000000e+00 : f32
    %29 = vector.broadcast %cst_16 : f32 to vector<8x256xf32>
    %30 = arith.subf %29, %26 : vector<8x256xf32>
    %31 = arith.divf %28, %30 : vector<8x256xf32>
    %cst_17 = arith.constant 0.000000e+00 : f32
    %32 = vector.broadcast %cst_17 : f32 to vector<8x256xf32>
    %33 = arith.cmpf ogt, %23, %32 : vector<8x256xf32>
    %34 = arith.select %33, %23, %31 : vector<8x256xi1>, vector<8x256xf32>
    %c0_18 = arith.constant 0 : index
    %c0_19 = arith.constant 0 : index
    %35 = vector.load %arg6[%c0_18, %c0_19] : memref<256x256xbf16, #tpu.memory_space<vmem>>, vector<256x256xbf16>
    %36 = arith.extf %35 : vector<256x256xbf16> to vector<256x256xf32>
    %cst_20 = arith.constant dense<0.000000e+00> : vector<8x256xf32>
    %37 = tpu.matmul %34, %36, %cst_20 {dimension_numbers = #tpu.dot_dimension_numbers<[1], [0], [0], [1], [0, 0, 1, 1], [], []>} : vector<8x256xf32>, vector<256x256xf32>, vector<8x256xf32> -> vector<8x256xf32>
    %c0_21 = arith.constant 0 : index
    %c0_22 = arith.constant 0 : index
    %38 = vector.load %arg7[%c0_21, %c0_22] : memref<1x256xf32, #tpu.memory_space<vmem>>, vector<1x256xf32>
    %39 = vector.broadcast %38 : vector<1x256xf32> to vector<8x256xf32>
    %40 = arith.addf %37, %39 : vector<8x256xf32>
    %cst_23 = arith.constant 5.000000e-01 : f32
    %41 = vector.broadcast %cst_23 : f32 to vector<8x256xf32>
    %42 = arith.mulf %41, %40 : vector<8x256xf32>
    %43 = math.tanh %42 : vector<8x256xf32>
    %cst_24 = arith.constant 2.000000e+00 : f32
    %44 = vector.broadcast %cst_24 : f32 to vector<8x256xf32>
    %45 = arith.mulf %44, %43 : vector<8x256xf32>
    %cst_25 = arith.constant 1.000000e+00 : f32
    %46 = vector.broadcast %cst_25 : f32 to vector<8x256xf32>
    %47 = arith.subf %46, %43 : vector<8x256xf32>
    %48 = arith.divf %45, %47 : vector<8x256xf32>
    %cst_26 = arith.constant 0.000000e+00 : f32
    %49 = vector.broadcast %cst_26 : f32 to vector<8x256xf32>
    %50 = arith.cmpf ogt, %40, %49 : vector<8x256xf32>
    %51 = arith.select %50, %40, %48 : vector<8x256xi1>, vector<8x256xf32>
    %c0_27 = arith.constant 0 : index
    %c0_28 = arith.constant 0 : index
    %52 = vector.load %arg8[%c0_27, %c0_28] : memref<256x4xbf16, #tpu.memory_space<vmem>>, vector<256x4xbf16>
    %53 = arith.extf %52 : vector<256x4xbf16> to vector<256x4xf32>
    %cst_29 = arith.constant dense<0.000000e+00> : vector<8x4xf32>
    %54 = tpu.matmul %51, %53, %cst_29 {dimension_numbers = #tpu.dot_dimension_numbers<[1], [0], [0], [1], [0, 0, 1, 1], [], []>} : vector<8x256xf32>, vector<256x4xf32>, vector<8x4xf32> -> vector<8x4xf32>
    %c0_30 = arith.constant 0 : index
    %c0_31 = arith.constant 0 : index
    %55 = vector.load %arg9[%c0_30, %c0_31] : memref<1x4xf32, #tpu.memory_space<vmem>>, vector<1x4xf32>
    %56 = vector.broadcast %55 : vector<1x4xf32> to vector<8x4xf32>
    %57 = arith.addf %54, %56 : vector<8x4xf32>
    %58 = tpu.iota {dimensions = array<i32: 1>} : vector<8x4xi32>
    %c2_i32 = arith.constant 2 : i32
    %59 = vector.broadcast %c2_i32 : i32 to vector<8x4xi32>
    %60 = arith.cmpi sge, %58, %59 : vector<8x4xi32>
    %cst_32 = arith.constant -4.000000e+00 : f32
    %cst_33 = arith.constant 4.000000e+00 : f32
    %61 = vector.broadcast %cst_32 : f32 to vector<8x4xf32>
    %62 = arith.maximumf %61, %57 : vector<8x4xf32>
    %63 = vector.broadcast %cst_33 : f32 to vector<8x4xf32>
    %64 = arith.minimumf %63, %62 : vector<8x4xf32>
    %65 = arith.select %60, %64, %57 : vector<8x4xi1>, vector<8x4xf32>
    %c0_34 = arith.constant 0 : index
    %c0_35 = arith.constant 0 : index
    %66 = vector.load %arg10[%c0_34, %c0_35] : memref<8x4xf32, #tpu.memory_space<vmem>>, vector<8x4xf32>
    tpu.vector_store %arg10[%c0_34, %c0_35], %65 {strides = array<i32>} : memref<8x4xf32, #tpu.memory_space<vmem>>, vector<8x4xf32>,
    %c0_36 = arith.constant 0 : index
    %c0_37 = arith.constant 0 : index
    %67 = vector.load %arg11[%c0_36, %c0_37] : memref<8x256xf32, #tpu.memory_space<vmem>>, vector<8x256xf32>
    tpu.vector_store %arg11[%c0_36, %c0_37], %51 {strides = array<i32>} : memref<8x256xf32, #tpu.memory_space<vmem>>, vector<8x256xf32>,
    return
  }
  func.func @transform_0(%arg0: i32) -> (i32, i32) {
    %c0_i32 = arith.constant 0 : i32
    %c0_i32_0 = arith.constant 0 : i32
    return %arg0, %c0_i32 : i32, i32
  }
  func.func @transform_1(%arg0: i32) -> (i32, i32) {
    %c0_i32 = arith.constant 0 : i32
    %c0_i32_0 = arith.constant 0 : i32
    %c0_i32_1 = arith.constant 0 : i32
    return %c0_i32, %c0_i32_0 : i32, i32
  }
  func.func @transform_2(%arg0: i32) -> (i32, i32) {
    %c0_i32 = arith.constant 0 : i32
    %c0_i32_0 = arith.constant 0 : i32
    %c0_i32_1 = arith.constant 0 : i32
    return %c0_i32, %c0_i32_0 : i32, i32
  }
  func.func @transform_3(%arg0: i32) -> (i32, i32) {
    %c0_i32 = arith.constant 0 : i32
    %c0_i32_0 = arith.constant 0 : i32
    %c0_i32_1 = arith.constant 0 : i32
    return %c0_i32, %c0_i32_0 : i32, i32
  }
  func.func @transform_4(%arg0: i32) -> (i32, i32) {
    %c0_i32 = arith.constant 0 : i32
    %c0_i32_0 = arith.constant 0 : i32
    %c0_i32_1 = arith.constant 0 : i32
    return %c0_i32, %c0_i32_0 : i32, i32
  }
  func.func @transform_5(%arg0: i32) -> (i32, i32) {
    %c0_i32 = arith.constant 0 : i32
    %c0_i32_0 = arith.constant 0 : i32
    %c0_i32_1 = arith.constant 0 : i32
    return %c0_i32, %c0_i32_0 : i32, i32
  }
  func.func @transform_6(%arg0: i32) -> (i32, i32) {
    %c0_i32 = arith.constant 0 : i32
    %c0_i32_0 = arith.constant 0 : i32
    %c0_i32_1 = arith.constant 0 : i32
    return %c0_i32, %c0_i32_0 : i32, i32
  }
  func.func @transform_7(%arg0: i32) -> (i32, i32) {
    %c0_i32 = arith.constant 0 : i32
    %c0_i32_0 = arith.constant 0 : i32
    %c0_i32_1 = arith.constant 0 : i32
    return %c0_i32, %c0_i32_0 : i32, i32
  }
  func.func @transform_8(%arg0: i32) -> (i32, i32) {
    %c0_i32 = arith.constant 0 : i32
    %c0_i32_0 = arith.constant 0 : i32
    %c0_i32_1 = arith.constant 0 : i32
    return %c0_i32, %c0_i32_0 : i32, i32
  }
  func.func @transform_9(%arg0: i32) -> (i32, i32) {
    %c0_i32 = arith.constant 0 : i32
    %c0_i32_0 = arith.constant 0 : i32
    return %arg0, %c0_i32 : i32, i32
  }
  func.func @transform_10(%arg0: i32) -> (i32, i32) {
    %c0_i32 = arith.constant 0 : i32
    %c0_i32_0 = arith.constant 0 : i32
    return %arg0, %c0_i32 : i32, i32
  }
}

</mosaic_0001>

<llo_original>
// kernel: tpu_custom_call.1
$region0: #{tpu_custom_call.1}
  #allocation0 [shape = 'u32[]', space=smem, size = 0x4, offset = 0x4, fixed_abs, tag = 'smem constant byte address 0x4 - core index']
  #allocation1 [shape = 'u32[72,128]{1,0:T(1,128)}', space=vmem, size = 0x9000, scoped, tag = 'internal scratch']
  %s0 = inlined_call_operand.vmem [shape: f32[8,10], index: 0, kind: input, shape index: {}]
  %s1 = inlined_call_operand.vmem [shape: bf16[10,256], index: 1, kind: input, shape index: {}]
  %s2 = inlined_call_operand.vmem [shape: f32[1,256], index: 2, kind: input, shape index: {}]
  %s3 = inlined_call_operand.hbm [shape: bf16[256,256], index: 3, kind: input, shape index: {}]
  %s4 = inlined_call_operand.vmem [shape: f32[1,256], index: 4, kind: input, shape index: {}]
  %s5 = inlined_call_operand.hbm [shape: bf16[256,256], index: 5, kind: input, shape index: {}]
  %s6 = inlined_call_operand.vmem [shape: f32[1,256], index: 6, kind: input, shape index: {}]
  %s7 = inlined_call_operand.vmem [shape: bf16[256,4], index: 7, kind: input, shape index: {}]
  %s8 = inlined_call_operand.vmem [shape: f32[1,4], index: 8, kind: input, shape index: {}]
  %s9 = inlined_call_operand.vmem [shape: f32[8,4], index: 9, kind: output, shape index: {0}]
  %s10 = inlined_call_operand.hbm [shape: f32[8,256], index: 10, kind: output, shape index: {1}]
  %11 = xla_tuple %s9, %s10
  %s12 = sld [smem:[#allocation0]]
  $region62: #{tpu_custom_call.1} parent=0
    _
  %s14 = ssub.s32 1, %s12
  %s15 = scalar_select 0, %s14, %s12
  $region1: #{tpu_custom_call.1} parent=0
    #allocation2 [shape = 'u8[131072]{0}', space=vmem, size = 0x20000, scoped, tag = 'input window, operand 3, single buffered']
    #allocation3 [shape = 's32[1]{0}', space=sflag, size = 0x4, scoped, tag = 'scoped memory for tpu_custom_call.1']
    #allocation4 [shape = 's32[1]{0}', space=sflag, size = 0x4, scoped, tag = 'scoped memory for tpu_custom_call.1']
    #allocation5 [shape = 'u8[131072]{0}', space=vmem, size = 0x20000, scoped, tag = 'input window, operand 5, single buffered']
    #allocation6 [shape = 's32[1]{0}', space=sflag, size = 0x4, scoped, tag = 'scoped memory for tpu_custom_call.1']
    #allocation7 [shape = 'u8[8192]{0}', space=vmem, size = 0x2000, scoped, tag = 'output window, operand 1, single buffered']
    %16 = vsyncpa [#allocation3], 0
    %17 = vsyncpa [#allocation6], 0
    %18 = vsyncpa [#allocation4], 0
    // Predicated region
    $region2: #{tpu_custom_call.1} parent=1 // pred_check
      _
    $region3: #{tpu_custom_call.1} parent=1 // pred_check_branch
      %20 = sbr.rel (0) target = $region5
    $region4: #{tpu_custom_call.1} parent=1 // pred_region
      _
    $region5: #{tpu_custom_call.1} parent=1 // pred_fallthru
      _
    // Predicated region
    $region6: #{tpu_custom_call.1} parent=1 // pred_check
      _
    $region7: #{tpu_custom_call.1} parent=1 // pred_check_branch
      %22 = sbr.rel (0) target = $region9
    $region8: #{tpu_custom_call.1} parent=1 // pred_region
      _
    $region9: #{tpu_custom_call.1} parent=1 // pred_fallthru
      _
    // Predicated region
    $region10: #{tpu_custom_call.1} parent=1 // pred_check
      _
    $region11: #{tpu_custom_call.1} parent=1 // pred_check_branch
      %24 = sbr.rel (0) target = $region13
    $region12: #{tpu_custom_call.1} parent=1 // pred_region
      _
    $region13: #{tpu_custom_call.1} parent=1 // pred_fallthru
      _
    // Predicated region
    $region14: #{tpu_custom_call.1} parent=1 // pred_check
      _
    $region15: #{tpu_custom_call.1} parent=1 // pred_check_branch
      %26 = sbr.rel (0) target = $region17
    $region16: #{tpu_custom_call.1} parent=1 // pred_region
      %28 = vsyncadd [#allocation3], 0
      %s29 = sshll.u32 %s3, 4
      %s30 = int_to_ptr.hbm [resolvable:$true] %s29
      %s31 = sshll.u32 [#allocation2], 4
      %s32 = int_to_ptr.vmem [resolvable:$true] %s31
      %37 = dma.hbm_to_vmem [thread:$0]  %s30, 4096, %s32, [#allocation3], 128, 128, 8
    $region17: #{tpu_custom_call.1} parent=1 // pred_fallthru
      _
    // Predicated region
    $region18: #{tpu_custom_call.1} parent=1 // pred_check
      _
    $region19: #{tpu_custom_call.1} parent=1 // pred_check_branch
      %39 = sbr.rel (0) target = $region21
    $region20: #{tpu_custom_call.1} parent=1 // pred_region
      _
    $region21: #{tpu_custom_call.1} parent=1 // pred_fallthru
      _
    // Predicated region
    $region22: #{tpu_custom_call.1} parent=1 // pred_check
      _
    $region23: #{tpu_custom_call.1} parent=1 // pred_check_branch
      %41 = sbr.rel (0) target = $region25
    $region24: #{tpu_custom_call.1} parent=1 // pred_region
      %43 = vsyncadd [#allocation6], 0
      %s44 = sshll.u32 %s5, 4
      %s45 = int_to_ptr.hbm [resolvable:$true] %s44
      %s46 = sshll.u32 [#allocation5], 4
      %s47 = int_to_ptr.vmem [resolvable:$true] %s46
      %52 = dma.hbm_to_vmem [thread:$0]  %s45, 4096, %s47, [#allocation6], 128, 128, 8
    $region25: #{tpu_custom_call.1} parent=1 // pred_fallthru
      _
    // Predicated region
    $region26: #{tpu_custom_call.1} parent=1 // pred_check
      _
    $region27: #{tpu_custom_call.1} parent=1 // pred_check_branch
      %54 = sbr.rel (0) target = $region29
    $region28: #{tpu_custom_call.1} parent=1 // pred_region
      _
    $region29: #{tpu_custom_call.1} parent=1 // pred_fallthru
      _
    // Predicated region
    $region30: #{tpu_custom_call.1} parent=1 // pred_check
      _
    $region31: #{tpu_custom_call.1} parent=1 // pred_check_branch
      %56 = sbr.rel (0) target = $region33
    $region32: #{tpu_custom_call.1} parent=1 // pred_region
      _
    $region33: #{tpu_custom_call.1} parent=1 // pred_fallthru
      _
    // Predicated region
    $region34: #{tpu_custom_call.1} parent=1 // pred_check
      _
    $region35: #{tpu_custom_call.1} parent=1 // pred_check_branch
      %58 = sbr.rel (0) target = $region37
    $region36: #{tpu_custom_call.1} parent=1 // pred_region
      _
    $region37: #{tpu_custom_call.1} parent=1 // pred_fallthru
      _
    // Predicated region
    $region38: #{tpu_custom_call.1} parent=1 // pred_check
      _
    $region39: #{tpu_custom_call.1} parent=1 // pred_check_branch
      %60 = sbr.rel (0) target = $region41
    $region40: #{tpu_custom_call.1} parent=1 // pred_region
      %62 = dma.done [#allocation3], 4096
    $region41: #{tpu_custom_call.1} parent=1 // pred_fallthru
      _
    // Predicated region
    $region42: #{tpu_custom_call.1} parent=1 // pred_check
      _
    $region43: #{tpu_custom_call.1} parent=1 // pred_check_branch
      %64 = sbr.rel (0) target = $region45
    $region44: #{tpu_custom_call.1} parent=1 // pred_region
      %66 = dma.done [#allocation6], 4096
    $region45: #{tpu_custom_call.1} parent=1 // pred_fallthru
      _
    %v67 = vld [vmem:[%s0] sm:$0xff]
    %v68 = vld [vmem:[%s1] sm:$0xff]
    %v69 = vld [vmem:[%s1 + $0x8] sm:$0x11]
    %v70 = vunpack.c.l.bf16 %v68
    %v71 = vunpack.c.h.bf16 %v68
    %v72 = vunpack.c.l.bf16 %v69
    %v73 = vunpack.c.h.bf16 %v69
    %v74 = vld [vmem:[%s2] sm:$0x3]
    %v76 = vperm.slane %v74, 0
    %v77 = vperm.slane %v74, 1
    %vm80 = vcmask 80896
    %v82 = vsel %vm80, %v67, 0
    %vm84 = vcmask 1041408
    %v86 = vsel %vm84, %v72, 0
    %v89 = vsel %vm84, %v73, 0
    %91 = vmatpush.msra.mxu0 0.0
    %92 = vmatpush.msra.mxu0 0.0
    %93 = vmatpush.msra.mxu0 0.0
    %94 = vmatpush.msra.mxu0 0.0
    %95 = vmatpush.msra.mxu0 0.0
    %96 = vmatpush.msra.mxu0 0.0
    %97 = vmatpush.msra.mxu0 0.0
    %98 = vmatpush.msra.mxu0 0.0
    %99 = vmatpush.msra.mxu0 0.0
    %100 = vmatpush.msra.mxu0 0.0
    %101 = vmatpush.msra.mxu0 0.0
    %102 = vmatpush.msra.mxu0 0.0
    %103 = vmatpush.msra.mxu0 0.0
    %104 = vmatpush.msra.mxu0 0.0
    %105 = vmatpush.msra.mxu0 %v86
    %106 = vmatpush.msra.mxu0 %v70
    %107 = vmatmul.f32.gmra.mxu0 %v82
    %v108 = vpop.f32.mrf.mxu0
    %v109 = vadd.f32 %v76, %v108
    %110 = vdwg.mxu0
    %111 = vmatpush.msra.mxu0 0.0
    %112 = vmatpush.msra.mxu0 0.0
    %113 = vmatpush.msra.mxu0 0.0
    %114 = vmatpush.msra.mxu0 0.0
    %115 = vmatpush.msra.mxu0 0.0
    %116 = vmatpush.msra.mxu0 0.0
    %117 = vmatpush.msra.mxu0 0.0
    %118 = vmatpush.msra.mxu0 0.0
    %119 = vmatpush.msra.mxu0 0.0
    %120 = vmatpush.msra.mxu0 0.0
    %121 = vmatpush.msra.mxu0 0.0
    %122 = vmatpush.msra.mxu0 0.0
    %123 = vmatpush.msra.mxu0 0.0
    %124 = vmatpush.msra.mxu0 0.0
    %125 = vmatpush.msra.mxu0 %v89
    %126 = vmatpush.msra.mxu0 %v71
    %127 = vmatmul.f32.gmra.mxu0 %v82
    %v128 = vpop.f32.mrf.mxu0
    %v129 = vadd.f32 %v77, %v128
    %130 = vdwg.mxu0
    %v131 = vmul.f32 %v109, 0.5
    %v132 = vmul.f32 %v129, 0.5
    %v133 = vtanh.pop %v131
    %v134 = vtanh.pop %v132
    %v135 = vmul.f32 %v133, 2.0
    %v136 = vmul.f32 %v134, 2.0
    %v137 = vsub.f32 1.0, %v133
    %v138 = vsub.f32 1.0, %v134
    %v139 = vrcp.pop %v137
    %v140 = vmul.f32 %v137, %v139
    %v141 = vsub.f32 1.0, %v140
    %v142 = vmul.f32 %v139, %v141
    %v143 = vadd.f32 %v139, %v142
    %vm144 = vweird.f32 %v137
    %vm145 = vweird.f32 %v139
    %vm146 = vmor %vm144, %vm145
    %v147 = vsel %vm146, %v139, %v143
    %v148 = vand.u32 2147483647, %v137
    %vm149 = vcmp.eq.f32.partialorder %v148, 8.507059e+37
    %v150 = vand.u32 %v137, 2147483648
    %v151 = vor.u32 1.1754944e-38, %v150
    %v152 = vsel %vm149, %v151, %v147
    %v153 = vmul.f32 %v135, %v152
    %v154 = vrcp.pop %v138
    %v155 = vmul.f32 %v138, %v154
    %v156 = vsub.f32 1.0, %v155
    %v157 = vmul.f32 %v154, %v156
    %v158 = vadd.f32 %v154, %v157
    %vm159 = vweird.f32 %v138
    %vm160 = vweird.f32 %v154
    %vm161 = vmor %vm159, %vm160
    %v162 = vsel %vm161, %v154, %v158
    %v163 = vand.u32 2147483647, %v138
    %vm164 = vcmp.eq.f32.partialorder %v163, 8.507059e+37
    %v165 = vand.u32 %v138, 2147483648
    %v166 = vor.u32 1.1754944e-38, %v165
    %v167 = vsel %vm164, %v166, %v162
    %v168 = vmul.f32 %v136, %v167
    %vm169 = vcmp.gt.f32.partialorder %v109, 0.0
    %vm170 = vcmp.gt.f32.partialorder %v129, 0.0
    %v171 = vsel %vm169, %v109, %v153
    %v172 = vsel %vm170, %v129, %v168
    %v173 = vld [vmem:[#allocation2] sm:$0xff]
    %v174 = vld [vmem:[#allocation2 + $0x8] sm:$0xff]
    %v175 = vld [vmem:[#allocation2 + $0x10] sm:$0xff]
    %v176 = vld [vmem:[#allocation2 + $0x18] sm:$0xff]
    %v177 = vld [vmem:[#allocation2 + $0x20] sm:$0xff]
    %v178 = vld [vmem:[#allocation2 + $0x28] sm:$0xff]
    %v179 = vld [vmem:[#allocation2 + $0x30] sm:$0xff]
    %v180 = vld [vmem:[#allocation2 + $0x38] sm:$0xff]
    %v181 = vld [vmem:[#allocation2 + $0x40] sm:$0xff]
    %v182 = vld [vmem:[#allocation2 + $0x48] sm:$0xff]
    %v183 = vld [vmem:[#allocation2 + $0x50] sm:$0xff]
    %v184 = vld [vmem:[#allocation2 + $0x58] sm:$0xff]
    %v185 = vld [vmem:[#allocation2 + $0x60] sm:$0xff]
    %v186 = vld [vmem:[#allocation2 + $0x68] sm:$0xff]
    %v187 = vld [vmem:[#allocation2 + $0x70] sm:$0xff]
    %v188 = vld [vmem:[#allocation2 + $0x78] sm:$0xff]
    %v189 = vld [vmem:[#allocation2 + $0x80] sm:$0xff]
    %v190 = vld [vmem:[#allocation2 + $0x88] sm:$0xff]
    %v191 = vld [vmem:[#allocation2 + $0x90] sm:$0xff]
    %v192 = vld [vmem:[#allocation2 + $0x98] sm:$0xff]
    %v193 = vld [vmem:[#allocation2 + $0xa0] sm:$0xff]
    %v194 = vld [vmem:[#allocation2 + $0xa8] sm:$0xff]
    %v195 = vld [vmem:[#allocation2 + $0xb0] sm:$0xff]
    %v196 = vld [vmem:[#allocation2 + $0xb8] sm:$0xff]
    %v197 = vld [vmem:[#allocation2 + $0xc0] sm:$0xff]
    %v198 = vld [vmem:[#allocation2 + $0xc8] sm:$0xff]
    %v199 = vld [vmem:[#allocation2 + $0xd0] sm:$0xff]
    %v200 = vld [vmem:[#allocation2 + $0xd8] sm:$0xff]
    %v201 = vld [vmem:[#allocation2 + $0xe0] sm:$0xff]
    %v202 = vld [vmem:[#allocation2 + $0xe8] sm:$0xff]
    %v203 = vld [vmem:[#allocation2 + $0xf0] sm:$0xff]
    %v204 = vld [vmem:[#allocation2 + $0xf8] sm:$0xff]
    %v205 = vunpack.c.l.bf16 %v173
    %v206 = vunpack.c.h.bf16 %v173
    %v207 = vunpack.c.l.bf16 %v174
    %v208 = vunpack.c.h.bf16 %v174
    %v209 = vunpack.c.l.bf16 %v175
    %v210 = vunpack.c.h.bf16 %v175
    %v211 = vunpack.c.l.bf16 %v176
    %v212 = vunpack.c.h.bf16 %v176
    %v213 = vunpack.c.l.bf16 %v177
    %v214 = vunpack.c.h.bf16 %v177
    %v215 = vunpack.c.l.bf16 %v178
    %v216 = vunpack.c.h.bf16 %v178
    %v217 = vunpack.c.l.bf16 %v179
    %v218 = vunpack.c.h.bf16 %v179
    %v219 = vunpack.c.l.bf16 %v180
    %v220 = vunpack.c.h.bf16 %v180
    %v221 = vunpack.c.l.bf16 %v181
    %v222 = vunpack.c.h.bf16 %v181
    %v223 = vunpack.c.l.bf16 %v182
    %v224 = vunpack.c.h.bf16 %v182
    %v225 = vunpack.c.l.bf16 %v183
    %v226 = vunpack.c.h.bf16 %v183
    %v227 = vunpack.c.l.bf16 %v184
    %v228 = vunpack.c.h.bf16 %v184
    %v229 = vunpack.c.l.bf16 %v185
    %v230 = vunpack.c.h.bf16 %v185
    %v231 = vunpack.c.l.bf16 %v186
    %v232 = vunpack.c.h.bf16 %v186
    %v233 = vunpack.c.l.bf16 %v187
    %v234 = vunpack.c.h.bf16 %v187
    %v235 = vunpack.c.l.bf16 %v188
    %v236 = vunpack.c.h.bf16 %v188
    %v237 = vunpack.c.l.bf16 %v189
    %v238 = vunpack.c.h.bf16 %v189
    %v239 = vunpack.c.l.bf16 %v190
    %v240 = vunpack.c.h.bf16 %v190
    %v241 = vunpack.c.l.bf16 %v191
    %v242 = vunpack.c.h.bf16 %v191
    %v243 = vunpack.c.l.bf16 %v192
    %v244 = vunpack.c.h.bf16 %v192
    %v245 = vunpack.c.l.bf16 %v193
    %v246 = vunpack.c.h.bf16 %v193
    %v247 = vunpack.c.l.bf16 %v194
    %v248 = vunpack.c.h.bf16 %v194
    %v249 = vunpack.c.l.bf16 %v195
    %v250 = vunpack.c.h.bf16 %v195
    %v251 = vunpack.c.l.bf16 %v196
    %v252 = vunpack.c.h.bf16 %v196
    %v253 = vunpack.c.l.bf16 %v197
    %v254 = vunpack.c.h.bf16 %v197
    %v255 = vunpack.c.l.bf16 %v198
    %v256 = vunpack.c.h.bf16 %v198
    %v257 = vunpack.c.l.bf16 %v199
    %v258 = vunpack.c.h.bf16 %v199
    %v259 = vunpack.c.l.bf16 %v200
    %v260 = vunpack.c.h.bf16 %v200
    %v261 = vunpack.c.l.bf16 %v201
    %v262 = vunpack.c.h.bf16 %v201
    %v263 = vunpack.c.l.bf16 %v202
    %v264 = vunpack.c.h.bf16 %v202
    %v265 = vunpack.c.l.bf16 %v203
    %v266 = vunpack.c.h.bf16 %v203
    %v267 = vunpack.c.l.bf16 %v204
    %v268 = vunpack.c.h.bf16 %v204
    %v269 = vld [vmem:[%s4] sm:$0x3]
    %v271 = vperm.slane %v269, 0
    %v272 = vperm.slane %v269, 1
    %275 = vmatpush.msra.mxu0 %v235
    %276 = vmatpush.msra.mxu0 %v233
    %277 = vmatpush.msra.mxu0 %v231
    %278 = vmatpush.msra.mxu0 %v229
    %279 = vmatpush.msra.mxu0 %v227
    %280 = vmatpush.msra.mxu0 %v225
    %281 = vmatpush.msra.mxu0 %v223
    %282 = vmatpush.msra.mxu0 %v221
    %283 = vmatpush.msra.mxu0 %v219
    %284 = vmatpush.msra.mxu0 %v217
    %285 = vmatpush.msra.mxu0 %v215
    %286 = vmatpush.msra.mxu0 %v213
    %287 = vmatpush.msra.mxu0 %v211
    %288 = vmatpush.msra.mxu0 %v209
    %289 = vmatpush.msra.mxu0 %v207
    %290 = vmatpush.msra.mxu0 %v205
    %291 = vmatmul.f32.gmra.mxu0 %v171
    %v292 = vpop.f32.mrf.mxu0
    %v293 = vadd.f32 %v271, %v292
    %294 = vdwg.mxu0
    %295 = vmatpush.msra.mxu0 %v267
    %296 = vmatpush.msra.mxu0 %v265
    %297 = vmatpush.msra.mxu0 %v263
    %298 = vmatpush.msra.mxu0 %v261
    %299 = vmatpush.msra.mxu0 %v259
    %300 = vmatpush.msra.mxu0 %v257
    %301 = vmatpush.msra.mxu0 %v255
    %302 = vmatpush.msra.mxu0 %v253
    %303 = vmatpush.msra.mxu0 %v251
    %304 = vmatpush.msra.mxu0 %v249
    %305 = vmatpush.msra.mxu0 %v247
    %306 = vmatpush.msra.mxu0 %v245
    %307 = vmatpush.msra.mxu0 %v243
    %308 = vmatpush.msra.mxu0 %v241
    %309 = vmatpush.msra.mxu0 %v239
    %310 = vmatpush.msra.mxu0 %v237
    %311 = vmatmul.f32.gmra.mxu0 %v172
    %v312 = vpop.f32.mrf.mxu0
    %v313 = vadd.f32 %v293, %v312
    %314 = vdwg.mxu0
    %315 = vmatpush.msra.mxu0 %v236
    %316 = vmatpush.msra.mxu0 %v234
    %317 = vmatpush.msra.mxu0 %v232
    %318 = vmatpush.msra.mxu0 %v230
    %319 = vmatpush.msra.mxu0 %v228
    %320 = vmatpush.msra.mxu0 %v226
    %321 = vmatpush.msra.mxu0 %v224
    %322 = vmatpush.msra.mxu0 %v222
    %323 = vmatpush.msra.mxu0 %v220
    %324 = vmatpush.msra.mxu0 %v218
    %325 = vmatpush.msra.mxu0 %v216
    %326 = vmatpush.msra.mxu0 %v214
    %327 = vmatpush.msra.mxu0 %v212
    %328 = vmatpush.msra.mxu0 %v210
    %329 = vmatpush.msra.mxu0 %v208
    %330 = vmatpush.msra.mxu0 %v206
    %331 = vmatmul.f32.gmra.mxu0 %v171
    %v332 = vpop.f32.mrf.mxu0
    %v333 = vadd.f32 %v272, %v332
    %334 = vdwg.mxu0
    %335 = vmatpush.msra.mxu0 %v268
    %336 = vmatpush.msra.mxu0 %v266
    %337 = vmatpush.msra.mxu0 %v264
    %338 = vmatpush.msra.mxu0 %v262
    %339 = vmatpush.msra.mxu0 %v260
    %340 = vmatpush.msra.mxu0 %v258
    %341 = vmatpush.msra.mxu0 %v256
    %342 = vmatpush.msra.mxu0 %v254
    %343 = vmatpush.msra.mxu0 %v252
    %344 = vmatpush.msra.mxu0 %v250
    %345 = vmatpush.msra.mxu0 %v248
    %346 = vmatpush.msra.mxu0 %v246
    %347 = vmatpush.msra.mxu0 %v244
    %348 = vmatpush.msra.mxu0 %v242
    %349 = vmatpush.msra.mxu0 %v240
    %350 = vmatpush.msra.mxu0 %v238
    %351 = vmatmul.f32.gmra.mxu0 %v172
    %v352 = vpop.f32.mrf.mxu0
    %v353 = vadd.f32 %v333, %v352
    %354 = vdwg.mxu0
    %v355 = vmul.f32 %v313, 0.5
    %v356 = vmul.f32 %v353, 0.5
    %v357 = vtanh.pop %v355
    %v358 = vtanh.pop %v356
    %v359 = vmul.f32 %v357, 2.0
    %v360 = vmul.f32 %v358, 2.0
    %v361 = vsub.f32 1.0, %v357
    %v362 = vsub.f32 1.0, %v358
    %v363 = vrcp.pop %v361
    %v364 = vmul.f32 %v361, %v363
    %v365 = vsub.f32 1.0, %v364
    %v366 = vmul.f32 %v363, %v365
    %v367 = vadd.f32 %v363, %v366
    %vm368 = vweird.f32 %v361
    %vm369 = vweird.f32 %v363
    %vm370 = vmor %vm368, %vm369
    %v371 = vsel %vm370, %v363, %v367
    %v372 = vand.u32 2147483647, %v361
    %vm373 = vcmp.eq.f32.partialorder %v372, 8.507059e+37
    %v374 = vand.u32 %v361, 2147483648
    %v375 = vor.u32 1.1754944e-38, %v374
    %v376 = vsel %vm373, %v375, %v371
    %v377 = vmul.f32 %v359, %v376
    %v378 = vrcp.pop %v362
    %v379 = vmul.f32 %v362, %v378
    %v380 = vsub.f32 1.0, %v379
    %v381 = vmul.f32 %v378, %v380
    %v382 = vadd.f32 %v378, %v381
    %vm383 = vweird.f32 %v362
    %vm384 = vweird.f32 %v378
    %vm385 = vmor %vm383, %vm384
    %v386 = vsel %vm385, %v378, %v382
    %v387 = vand.u32 2147483647, %v362
    %vm388 = vcmp.eq.f32.partialorder %v387, 8.507059e+37
    %v389 = vand.u32 %v362, 2147483648
    %v390 = vor.u32 1.1754944e-38, %v389
    %v391 = vsel %vm388, %v390, %v386
    %v392 = vmul.f32 %v360, %v391
    %vm393 = vcmp.gt.f32.partialorder %v313, 0.0
    %vm394 = vcmp.gt.f32.partialorder %v353, 0.0
    %v395 = vsel %vm393, %v313, %v377
    %v396 = vsel %vm394, %v353, %v392
    %v397 = vld [vmem:[#allocation5] sm:$0xff]
    %v398 = vld [vmem:[#allocation5 + $0x8] sm:$0xff]
    %v399 = vld [vmem:[#allocation5 + $0x10] sm:$0xff]
    %v400 = vld [vmem:[#allocation5 + $0x18] sm:$0xff]
    %v401 = vld [vmem:[#allocation5 + $0x20] sm:$0xff]
    %v402 = vld [vmem:[#allocation5 + $0x28] sm:$0xff]
    %v403 = vld [vmem:[#allocation5 + $0x30] sm:$0xff]
    %v404 = vld [vmem:[#allocation5 + $0x38] sm:$0xff]
    %v405 = vld [vmem:[#allocation5 + $0x40] sm:$0xff]
    %v406 = vld [vmem:[#allocation5 + $0x48] sm:$0xff]
    %v407 = vld [vmem:[#allocation5 + $0x50] sm:$0xff]
    %v408 = vld [vmem:[#allocation5 + $0x58] sm:$0xff]
    %v409 = vld [vmem:[#allocation5 + $0x60] sm:$0xff]
    %v410 = vld [vmem:[#allocation5 + $0x68] sm:$0xff]
    %v411 = vld [vmem:[#allocation5 + $0x70] sm:$0xff]
    %v412 = vld [vmem:[#allocation5 + $0x78] sm:$0xff]
    %v413 = vld [vmem:[#allocation5 + $0x80] sm:$0xff]
    %v414 = vld [vmem:[#allocation5 + $0x88] sm:$0xff]
    %v415 = vld [vmem:[#allocation5 + $0x90] sm:$0xff]
    %v416 = vld [vmem:[#allocation5 + $0x98] sm:$0xff]
    %v417 = vld [vmem:[#allocation5 + $0xa0] sm:$0xff]
    %v418 = vld [vmem:[#allocation5 + $0xa8] sm:$0xff]
    %v419 = vld [vmem:[#allocation5 + $0xb0] sm:$0xff]
    %v420 = vld [vmem:[#allocation5 + $0xb8] sm:$0xff]
    %v421 = vld [vmem:[#allocation5 + $0xc0] sm:$0xff]
    %v422 = vld [vmem:[#allocation5 + $0xc8] sm:$0xff]
    %v423 = vld [vmem:[#allocation5 + $0xd0] sm:$0xff]
    %v424 = vld [vmem:[#allocation5 + $0xd8] sm:$0xff]
    %v425 = vld [vmem:[#allocation5 + $0xe0] sm:$0xff]
    %v426 = vld [vmem:[#allocation5 + $0xe8] sm:$0xff]
    %v427 = vld [vmem:[#allocation5 + $0xf0] sm:$0xff]
    %v428 = vld [vmem:[#allocation5 + $0xf8] sm:$0xff]
    %v429 = vunpack.c.l.bf16 %v397
    %v430 = vunpack.c.h.bf16 %v397
    %v431 = vunpack.c.l.bf16 %v398
    %v432 = vunpack.c.h.bf16 %v398
    %v433 = vunpack.c.l.bf16 %v399
    %v434 = vunpack.c.h.bf16 %v399
    %v435 = vunpack.c.l.bf16 %v400
    %v436 = vunpack.c.h.bf16 %v400
    %v437 = vunpack.c.l.bf16 %v401
    %v438 = vunpack.c.h.bf16 %v401
    %v439 = vunpack.c.l.bf16 %v402
    %v440 = vunpack.c.h.bf16 %v402
    %v441 = vunpack.c.l.bf16 %v403
    %v442 = vunpack.c.h.bf16 %v403
    %v443 = vunpack.c.l.bf16 %v404
    %v444 = vunpack.c.h.bf16 %v404
    %v445 = vunpack.c.l.bf16 %v405
    %v446 = vunpack.c.h.bf16 %v405
    %v447 = vunpack.c.l.bf16 %v406
    %v448 = vunpack.c.h.bf16 %v406
    %v449 = vunpack.c.l.bf16 %v407
    %v450 = vunpack.c.h.bf16 %v407
    %v451 = vunpack.c.l.bf16 %v408
    %v452 = vunpack.c.h.bf16 %v408
    %v453 = vunpack.c.l.bf16 %v409
    %v454 = vunpack.c.h.bf16 %v409
    %v455 = vunpack.c.l.bf16 %v410
    %v456 = vunpack.c.h.bf16 %v410
    %v457 = vunpack.c.l.bf16 %v411
    %v458 = vunpack.c.h.bf16 %v411
    %v459 = vunpack.c.l.bf16 %v412
    %v460 = vunpack.c.h.bf16 %v412
    %v461 = vunpack.c.l.bf16 %v413
    %v462 = vunpack.c.h.bf16 %v413
    %v463 = vunpack.c.l.bf16 %v414
    %v464 = vunpack.c.h.bf16 %v414
    %v465 = vunpack.c.l.bf16 %v415
    %v466 = vunpack.c.h.bf16 %v415
    %v467 = vunpack.c.l.bf16 %v416
    %v468 = vunpack.c.h.bf16 %v416
    %v469 = vunpack.c.l.bf16 %v417
    %v470 = vunpack.c.h.bf16 %v417
    %v471 = vunpack.c.l.bf16 %v418
    %v472 = vunpack.c.h.bf16 %v418
    %v473 = vunpack.c.l.bf16 %v419
    %v474 = vunpack.c.h.bf16 %v419
    %v475 = vunpack.c.l.bf16 %v420
    %v476 = vunpack.c.h.bf16 %v420
    %v477 = vunpack.c.l.bf16 %v421
    %v478 = vunpack.c.h.bf16 %v421
    %v479 = vunpack.c.l.bf16 %v422
    %v480 = vunpack.c.h.bf16 %v422
    %v481 = vunpack.c.l.bf16 %v423
    %v482 = vunpack.c.h.bf16 %v423
    %v483 = vunpack.c.l.bf16 %v424
    %v484 = vunpack.c.h.bf16 %v424
    %v485 = vunpack.c.l.bf16 %v425
    %v486 = vunpack.c.h.bf16 %v425
    %v487 = vunpack.c.l.bf16 %v426
    %v488 = vunpack.c.h.bf16 %v426
    %v489 = vunpack.c.l.bf16 %v427
    %v490 = vunpack.c.h.bf16 %v427
    %v491 = vunpack.c.l.bf16 %v428
    %v492 = vunpack.c.h.bf16 %v428
    %v493 = vld [vmem:[%s6] sm:$0x3]
    %v495 = vperm.slane %v493, 0
    %v496 = vperm.slane %v493, 1
    %499 = vmatpush.msra.mxu0 %v459
    %500 = vmatpush.msra.mxu0 %v457
    %501 = vmatpush.msra.mxu0 %v455
    %502 = vmatpush.msra.mxu0 %v453
    %503 = vmatpush.msra.mxu0 %v451
    %504 = vmatpush.msra.mxu0 %v449
    %505 = vmatpush.msra.mxu0 %v447
    %506 = vmatpush.msra.mxu0 %v445
    %507 = vmatpush.msra.mxu0 %v443
    %508 = vmatpush.msra.mxu0 %v441
    %509 = vmatpush.msra.mxu0 %v439
    %510 = vmatpush.msra.mxu0 %v437
    %511 = vmatpush.msra.mxu0 %v435
    %512 = vmatpush.msra.mxu0 %v433
    %513 = vmatpush.msra.mxu0 %v431
    %514 = vmatpush.msra.mxu0 %v429
    %515 = vmatmul.f32.gmra.mxu0 %v395
    %v516 = vpop.f32.mrf.mxu0
    %v517 = vadd.f32 %v495, %v516
    %518 = vdwg.mxu0
    %519 = vmatpush.msra.mxu0 %v491
    %520 = vmatpush.msra.mxu0 %v489
    %521 = vmatpush.msra.mxu0 %v487
    %522 = vmatpush.msra.mxu0 %v485
    %523 = vmatpush.msra.mxu0 %v483
    %524 = vmatpush.msra.mxu0 %v481
    %525 = vmatpush.msra.mxu0 %v479
    %526 = vmatpush.msra.mxu0 %v477
    %527 = vmatpush.msra.mxu0 %v475
    %528 = vmatpush.msra.mxu0 %v473
    %529 = vmatpush.msra.mxu0 %v471
    %530 = vmatpush.msra.mxu0 %v469
    %531 = vmatpush.msra.mxu0 %v467
    %532 = vmatpush.msra.mxu0 %v465
    %533 = vmatpush.msra.mxu0 %v463
    %534 = vmatpush.msra.mxu0 %v461
    %535 = vmatmul.f32.gmra.mxu0 %v396
    %v536 = vpop.f32.mrf.mxu0
    %v537 = vadd.f32 %v517, %v536
    %538 = vdwg.mxu0
    %539 = vmatpush.msra.mxu0 %v460
    %540 = vmatpush.msra.mxu0 %v458
    %541 = vmatpush.msra.mxu0 %v456
    %542 = vmatpush.msra.mxu0 %v454
    %543 = vmatpush.msra.mxu0 %v452
    %544 = vmatpush.msra.mxu0 %v450
    %545 = vmatpush.msra.mxu0 %v448
    %546 = vmatpush.msra.mxu0 %v446
    %547 = vmatpush.msra.mxu0 %v444
    %548 = vmatpush.msra.mxu0 %v442
    %549 = vmatpush.msra.mxu0 %v440
    %550 = vmatpush.msra.mxu0 %v438
    %551 = vmatpush.msra.mxu0 %v436
    %552 = vmatpush.msra.mxu0 %v434
    %553 = vmatpush.msra.mxu0 %v432
    %554 = vmatpush.msra.mxu0 %v430
    %555 = vmatmul.f32.gmra.mxu0 %v395
    %v556 = vpop.f32.mrf.mxu0
    %v557 = vadd.f32 %v496, %v556
    %558 = vdwg.mxu0
    %559 = vmatpush.msra.mxu0 %v492
    %560 = vmatpush.msra.mxu0 %v490
    %561 = vmatpush.msra.mxu0 %v488
    %562 = vmatpush.msra.mxu0 %v486
    %563 = vmatpush.msra.mxu0 %v484
    %564 = vmatpush.msra.mxu0 %v482
    %565 = vmatpush.msra.mxu0 %v480
    %566 = vmatpush.msra.mxu0 %v478
    %567 = vmatpush.msra.mxu0 %v476
    %568 = vmatpush.msra.mxu0 %v474
    %569 = vmatpush.msra.mxu0 %v472
    %570 = vmatpush.msra.mxu0 %v470
    %571 = vmatpush.msra.mxu0 %v468
    %572 = vmatpush.msra.mxu0 %v466
    %573 = vmatpush.msra.mxu0 %v464
    %574 = vmatpush.msra.mxu0 %v462
    %575 = vmatmul.f32.gmra.mxu0 %v396
    %v576 = vpop.f32.mrf.mxu0
    %v577 = vadd.f32 %v557, %v576
    %578 = vdwg.mxu0
    %v579 = vmul.f32 %v537, 0.5
    %v580 = vmul.f32 %v577, 0.5
    %v581 = vtanh.pop %v579
    %v582 = vtanh.pop %v580
    %v583 = vmul.f32 %v581, 2.0
    %v584 = vmul.f32 %v582, 2.0
    %v585 = vsub.f32 1.0, %v581
    %v586 = vsub.f32 1.0, %v582
    %v587 = vrcp.pop %v585
    %v588 = vmul.f32 %v585, %v587
    %v589 = vsub.f32 1.0, %v588
    %v590 = vmul.f32 %v587, %v589
    %v591 = vadd.f32 %v587, %v590
    %vm592 = vweird.f32 %v585
    %vm593 = vweird.f32 %v587
    %vm594 = vmor %vm592, %vm593
    %v595 = vsel %vm594, %v587, %v591
    %v596 = vand.u32 2147483647, %v585
    %vm597 = vcmp.eq.f32.partialorder %v596, 8.507059e+37
    %v598 = vand.u32 %v585, 2147483648
    %v599 = vor.u32 1.1754944e-38, %v598
    %v600 = vsel %vm597, %v599, %v595
    %v601 = vmul.f32 %v583, %v600
    %v602 = vrcp.pop %v586
    %v603 = vmul.f32 %v586, %v602
    %v604 = vsub.f32 1.0, %v603
    %v605 = vmul.f32 %v602, %v604
    %v606 = vadd.f32 %v602, %v605
    %vm607 = vweird.f32 %v586
    %vm608 = vweird.f32 %v602
    %vm609 = vmor %vm607, %vm608
    %v610 = vsel %vm609, %v602, %v606
    %v611 = vand.u32 2147483647, %v586
    %vm612 = vcmp.eq.f32.partialorder %v611, 8.507059e+37
    %v613 = vand.u32 %v586, 2147483648
    %v614 = vor.u32 1.1754944e-38, %v613
    %v615 = vsel %vm612, %v614, %v610
    %v616 = vmul.f32 %v584, %v615
    %vm617 = vcmp.gt.f32.partialorder %v537, 0.0
    %vm618 = vcmp.gt.f32.partialorder %v577, 0.0
    %v619 = vsel %vm617, %v537, %v601
    %v620 = vsel %vm618, %v577, %v616
    %v621 = vld [vmem:[%s7] sm:$0xf]
    %v622 = vld [vmem:[%s7 + $0x4] sm:$0xf]
    %v623 = vld [vmem:[%s7 + $0x8] sm:$0xf]
    %v624 = vld [vmem:[%s7 + $0xc] sm:$0xf]
    %v625 = vld [vmem:[%s7 + $0x10] sm:$0xf]
    %v626 = vld [vmem:[%s7 + $0x14] sm:$0xf]
    %v627 = vld [vmem:[%s7 + $0x18] sm:$0xf]
    %v628 = vld [vmem:[%s7 + $0x1c] sm:$0xf]
    %v629 = vld [vmem:[%s7 + $0x20] sm:$0xf]
    %v630 = vld [vmem:[%s7 + $0x24] sm:$0xf]
    %v631 = vld [vmem:[%s7 + $0x28] sm:$0xf]
    %v632 = vld [vmem:[%s7 + $0x2c] sm:$0xf]
    %v633 = vld [vmem:[%s7 + $0x30] sm:$0xf]
    %v634 = vld [vmem:[%s7 + $0x34] sm:$0xf]
    %v635 = vld [vmem:[%s7 + $0x38] sm:$0xf]
    %v636 = vld [vmem:[%s7 + $0x3c] sm:$0xf]
    %v637 = vld [vmem:[%s7 + $0x40] sm:$0xf]
    %v638 = vld [vmem:[%s7 + $0x44] sm:$0xf]
    %v639 = vld [vmem:[%s7 + $0x48] sm:$0xf]
    %v640 = vld [vmem:[%s7 + $0x4c] sm:$0xf]
    %v641 = vld [vmem:[%s7 + $0x50] sm:$0xf]
    %v642 = vld [vmem:[%s7 + $0x54] sm:$0xf]
    %v643 = vld [vmem:[%s7 + $0x58] sm:$0xf]
    %v644 = vld [vmem:[%s7 + $0x5c] sm:$0xf]
    %v645 = vld [vmem:[%s7 + $0x60] sm:$0xf]
    %v646 = vld [vmem:[%s7 + $0x64] sm:$0xf]
    %v647 = vld [vmem:[%s7 + $0x68] sm:$0xf]
    %v648 = vld [vmem:[%s7 + $0x6c] sm:$0xf]
    %v649 = vld [vmem:[%s7 + $0x70] sm:$0xf]
    %v650 = vld [vmem:[%s7 + $0x74] sm:$0xf]
    %v651 = vld [vmem:[%s7 + $0x78] sm:$0xf]
    %v652 = vld [vmem:[%s7 + $0x7c] sm:$0xf]
    %v653 = vunpack.c.l.bf16 %v621
    %v654 = vunpack.c.l.bf16 %v622
    %v655 = vunpack.c.l.bf16 %v623
    %v656 = vunpack.c.l.bf16 %v624
    %v657 = vunpack.c.l.bf16 %v625
    %v658 = vunpack.c.l.bf16 %v626
    %v659 = vunpack.c.l.bf16 %v627
    %v660 = vunpack.c.l.bf16 %v628
    %v661 = vunpack.c.l.bf16 %v629
    %v662 = vunpack.c.l.bf16 %v630
    %v663 = vunpack.c.l.bf16 %v631
    %v664 = vunpack.c.l.bf16 %v632
    %v665 = vunpack.c.l.bf16 %v633
    %v666 = vunpack.c.l.bf16 %v634
    %v667 = vunpack.c.l.bf16 %v635
    %v668 = vunpack.c.l.bf16 %v636
    %v669 = vunpack.c.l.bf16 %v637
    %v670 = vunpack.c.l.bf16 %v638
    %v671 = vunpack.c.l.bf16 %v639
    %v672 = vunpack.c.l.bf16 %v640
    %v673 = vunpack.c.l.bf16 %v641
    %v674 = vunpack.c.l.bf16 %v642
    %v675 = vunpack.c.l.bf16 %v643
    %v676 = vunpack.c.l.bf16 %v644
    %v677 = vunpack.c.l.bf16 %v645
    %v678 = vunpack.c.l.bf16 %v646
    %v679 = vunpack.c.l.bf16 %v647
    %v680 = vunpack.c.l.bf16 %v648
    %v681 = vunpack.c.l.bf16 %v649
    %v682 = vunpack.c.l.bf16 %v650
    %v683 = vunpack.c.l.bf16 %v651
    %v684 = vunpack.c.l.bf16 %v652
    %v685 = vld [vmem:[%s8] sm:$0x1]
    %v687 = vperm.slane %v685, 0
    %689 = vmatpush.msra.mxu0 %v668
    %690 = vmatpush.msra.mxu0 %v667
    %691 = vmatpush.msra.mxu0 %v666
    %692 = vmatpush.msra.mxu0 %v665
    %693 = vmatpush.msra.mxu0 %v664
    %694 = vmatpush.msra.mxu0 %v663
    %695 = vmatpush.msra.mxu0 %v662
    %696 = vmatpush.msra.mxu0 %v661
    %697 = vmatpush.msra.mxu0 %v660
    %698 = vmatpush.msra.mxu0 %v659
    %699 = vmatpush.msra.mxu0 %v658
    %700 = vmatpush.msra.mxu0 %v657
    %701 = vmatpush.msra.mxu0 %v656
    %702 = vmatpush.msra.mxu0 %v655
    %703 = vmatpush.msra.mxu0 %v654
    %704 = vmatpush.msra.mxu0 %v653
    %705 = vmatmul.f32.gmra.mxu0 %v619
    %v706 = vpop.f32.mrf.mxu0
    %v707 = vadd.f32 %v687, %v706
    %708 = vdwg.mxu0
    %709 = vmatpush.msra.mxu0 %v684
    %710 = vmatpush.msra.mxu0 %v683
    %711 = vmatpush.msra.mxu0 %v682
    %712 = vmatpush.msra.mxu0 %v681
    %713 = vmatpush.msra.mxu0 %v680
    %714 = vmatpush.msra.mxu0 %v679
    %715 = vmatpush.msra.mxu0 %v678
    %716 = vmatpush.msra.mxu0 %v677
    %717 = vmatpush.msra.mxu0 %v676
    %718 = vmatpush.msra.mxu0 %v675
    %719 = vmatpush.msra.mxu0 %v674
    %720 = vmatpush.msra.mxu0 %v673
    %721 = vmatpush.msra.mxu0 %v672
    %722 = vmatpush.msra.mxu0 %v671
    %723 = vmatpush.msra.mxu0 %v670
    %724 = vmatpush.msra.mxu0 %v669
    %725 = vmatmul.f32.gmra.mxu0 %v620
    %v726 = vpop.f32.mrf.mxu0
    %v727 = vadd.f32 %v707, %v726
    %728 = vdwg.mxu0
    %v729 = vlaneseq
    %v730 = vand.u32 %v729, 127
    %vm731 = vcmp.ge.s32.totalorder %v730, 2
    %v732 = vmax.f32 %v727, -4.0
    %v733 = vmin.f32 %v732, 4.0
    %v734 = vsel %vm731, %v733, %v727
    %vm735 = vcmask 31744
    %736 = vst.msk [vmem:[%s9] sm:$0xff] %vm735, %v734
    %737 = vst [vmem:[#allocation7] sm:$0xff] %v619
    %738 = vst [vmem:[#allocation7 + $0x8] sm:$0xff] %v620
    // Predicated region
    $region46: #{tpu_custom_call.1} parent=1 // pred_check
      _
    $region47: #{tpu_custom_call.1} parent=1 // pred_check_branch
      %740 = sbr.rel (0) target = $region49
    $region48: #{tpu_custom_call.1} parent=1 // pred_region
      _
    $region49: #{tpu_custom_call.1} parent=1 // pred_fallthru
      _
    // Predicated region
    $region50: #{tpu_custom_call.1} parent=1 // pred_check
      _
    $region51: #{tpu_custom_call.1} parent=1 // pred_check_branch
      %742 = sbr.rel (0) target = $region53
    $region52: #{tpu_custom_call.1} parent=1 // pred_region
      %744 = vsyncadd [#allocation4], 0
      %s746 = sshll.u32 [#allocation7], 4
      %s747 = int_to_ptr.vmem [resolvable:$true] %s746
      %s748 = sshll.u32 %s10, 4
      %s749 = int_to_ptr.hbm [resolvable:$true] %s748
      %751 = dma.vmem_to_hbm [thread:$0]  %s747, 256, %s749, [#allocation4]
    $region53: #{tpu_custom_call.1} parent=1 // pred_fallthru
      _
    // Predicated region
    $region54: #{tpu_custom_call.1} parent=1 // pred_check
      _
    $region55: #{tpu_custom_call.1} parent=1 // pred_check_branch
      %753 = sbr.rel (0) target = $region57
    $region56: #{tpu_custom_call.1} parent=1 // pred_region
      _
    $region57: #{tpu_custom_call.1} parent=1 // pred_fallthru
      _
    // Predicated region
    $region58: #{tpu_custom_call.1} parent=1 // pred_check
      _
    $region59: #{tpu_custom_call.1} parent=1 // pred_check_branch
      %755 = sbr.rel (0) target = $region61
    $region60: #{tpu_custom_call.1} parent=1 // pred_region
      %757 = dma.done [#allocation4], 256
    $region61: #{tpu_custom_call.1} parent=1 // pred_fallthru
      _
    %758 = vsyncpa [#allocation3], 1
    %759 = vsyncpa [#allocation6], 1
    %760 = vsyncpa [#allocation4], 1

</llo_original>
